<compile_context>
chip_gen: v5e
topology: v5e:2x2
jax: 0.10.0
libtpu: 0.0.40
codegen_flags: <defaults>
</compile_context>

<pallas_src>
import functools

import jax
import jax.numpy as jnp
import numpy as np
from jax.experimental import pallas as pl
from jax.experimental.pallas import tpu as pltpu


# --------------------------------------------------------------------------- #
# Boundary masks (built once per shape, become XLA constants): reproduce the
# zero padding of the conv1 input (W axis) and of the conv1 output (H axis).
# --------------------------------------------------------------------------- #
def _sep_boundary_masks(H, W, K, pad):
    p = np.arange(H * W)
    wo = p % W
    h = p // W
    m1 = np.stack([((wo + (kw - pad) >= 0) & (wo + (kw - pad) < W))
                   .astype(np.float32) for kw in range(K)])[:, None, :]
    m2 = np.stack([((h + (kh - pad) >= 0) & (h + (kh - pad) < H))
                   .astype(np.float32) for kh in range(K)])[:, None, :]
    return m1, m2       # each (K, 1, H*W)


# --------------------------------------------------------------------------- #
# Kernel 1: fused separable conv (1,K)->(K,1) + BatchNorm(batch stats) + ReLU.
# Whole batch in one grid step; channels-as-rows, pixels(=H*W)-as-lanes layout.
# --------------------------------------------------------------------------- #
def _sep_conv_bn_relu_kernel(x_ref, w1_ref, b1_ref, w2_ref, m1_ref, m2_ref,
                             gamma_ref, beta_ref, y_ref,
                             *, K, pad, W, eps, compute_dtype):
    # x_ref : (N, Cin, HW)    NCHW input, spatial dims pre-flattened (free reshape)
    # w1_ref: (K, Chid, Cin)  (1,K) taps          b1_ref: (Chid, 1)
    # w2_ref: (K, Cout, Chid) (K,1) taps  (its bias is dropped: train-BN cancels)
    # m1_ref/m2_ref: (K, 1, HW) 0/1 boundary masks for the W / H tap shifts
    # gamma_ref/beta_ref: (Cout, 1)       y_ref: (N, Cout, HW)
    N, _, HW = x_ref.shape
    Chid = w1_ref.shape[1]
    Cout = w2_ref.shape[1]

    def conv_pair(x_n):
        # conv1: (1,K) along W.  Per-tap MXU matmul (Chid,Cin)@(Cin,HW), f32 acc.
        hid = jnp.zeros((Chid, HW), jnp.float32)
        for kw in range(K):
            d = kw - pad
            if d == 0:
                xs = x_n
            else:
                xs = pltpu.roll(x_n, shift=(-d) % HW, axis=1) * m1_ref[kw]
            hid = hid + jnp.dot(w1_ref[kw], xs,
                                preferred_element_type=jnp.float32)
        hid = hid + b1_ref[...]                       # conv1 bias kept
        hid = hid.astype(compute_dtype)               # no-op at f32

        # conv2: (K,1) along H on the register-resident intermediate.  PyTorch's
        # zero padding of conv1's *output* is reproduced by m2 (virtual halo rows
        # read as zero); no padded buffer is ever materialized.
        acc = jnp.zeros((Cout, HW), jnp.float32)
        for kh in range(K):
            e = kh - pad
            if e == 0:
                hs = hid
            else:
                hs = pltpu.roll(hid, shift=(-e * W) % HW, axis=1) * m2_ref[kh]
            acc = acc + jnp.dot(w2_ref[kh], hs,
                                preferred_element_type=jnp.float32)
        # conv2 bias intentionally omitted: uniform per-channel shift is exactly
        # removed by the train-mode BatchNorm that follows.
        return acc

    ys = [conv_pair(x_ref[n]) for n in range(N)]      # each (Cout, HW), f32

    # ---- BatchNorm (batch statistics, two-pass variance) + ReLU epilogue ----
    cnt = float(N * HW)
    s = ys[0].sum(axis=1, keepdims=True)
    for n in range(1, N):
        s = s + ys[n].sum(axis=1, keepdims=True)
    mean = s * (1.0 / cnt)                            # (Cout, 1)
    csq = jnp.zeros_like(mean)
    for n in range(N):
        dlt = ys[n] - mean
        csq = csq + (dlt * dlt).sum(axis=1, keepdims=True)
    var = csq * (1.0 / cnt)
    scale = gamma_ref[...] * jax.lax.rsqrt(var + eps)
    shift = beta_ref[...] - mean * scale
    for n in range(N):
        y_ref[n] = jnp.maximum(ys[n] * scale + shift, 0.0).astype(y_ref.dtype)


def sep_conv_bn_relu_pallas(x_nchw, w1t, b1c, w2t, gamma2d, beta2d,
                            *, K, pad, eps=1e-5, compute_dtype=jnp.float32):
    N, Cin, H, W = x_nchw.shape
    # Fast fused path assumes size-preserving separable padding (all Inception
    # uses).  TODO(synk): general (shrinking) padding needs a different lane grid.
    assert 2 * pad == K - 1, "fused kernel assumes size-preserving padding"
    HW = H * W
    Chid = w1t.shape[1]
    Cout = w2t.shape[1]

    xf = x_nchw.reshape(N, Cin, HW)           # free row-major reshape, no HBM pass
    if xf.dtype != compute_dtype:
        xf = xf.astype(compute_dtype)         # narrow at the HBM boundary (bf16)
    m1_np, m2_np = _sep_boundary_masks(H, W, K, pad)
    m1 = jnp.asarray(m1_np, dtype=compute_dtype)
    m2 = jnp.asarray(m2_np, dtype=compute_dtype)

    kernel = functools.partial(_sep_conv_bn_relu_kernel, K=K, pad=pad, W=W,
                               eps=eps, compute_dtype=compute_dtype)
    y = pl.pallas_call(
        kernel,
        out_shape=jax.ShapeDtypeStruct((N, Cout, HW), jnp.float32),
        grid=(1,),
        in_specs=[pl.BlockSpec((N, Cin, HW), lambda i: (0, 0, 0)),
                  pl.BlockSpec((K, Chid, Cin), lambda i: (0, 0, 0)),
                  pl.BlockSpec((Chid, 1), lambda i: (0, 0)),
                  pl.BlockSpec((K, Cout, Chid), lambda i: (0, 0, 0)),
                  pl.BlockSpec((K, 1, HW), lambda i: (0, 0, 0)),
                  pl.BlockSpec((K, 1, HW), lambda i: (0, 0, 0)),
                  pl.BlockSpec((Cout, 1), lambda i: (0, 0)),
                  pl.BlockSpec((Cout, 1), lambda i: (0, 0))],
        out_specs=pl.BlockSpec((N, Cout, HW), lambda i: (0, 0, 0)),
        compiler_params=pltpu.CompilerParams(dimension_semantics=("arbitrary",)),
    )(xf, w1t, b1c, w2t, m1, m2, gamma2d, beta2d)
    return y.reshape(N, Cout, H, W)           # free reshape back to NCHW


# --------------------------------------------------------------------------- #
# Kernel 2: fused 1x1 conv + BatchNorm(batch stats) + ReLU.
# --------------------------------------------------------------------------- #
def _conv1x1_bn_relu_kernel(x_ref, wt_ref, gamma_ref, beta_ref, y_ref, *, eps):
    N, _, HW = x_ref.shape
    # conv bias dropped in-kernel (train-mode BN cancels a uniform shift).
    ys = [jnp.dot(wt_ref[...], x_ref[n], preferred_element_type=jnp.float32)
          for n in range(N)]                          # each (Cout, HW)
    cnt = float(N * HW)
    s = ys[0].sum(axis=1, keepdims=True)
    for n in range(1, N):
        s = s + ys[n].sum(axis=1, keepdims=True)
    mean = s * (1.0 / cnt)
    csq = jnp.zeros_like(mean)
    for n in range(N):
        dlt = ys[n] - mean
        csq = csq + (dlt * dlt).sum(axis=1, keepdims=True)
    var = csq * (1.0 / cnt)
    scale = gamma_ref[...] * jax.lax.rsqrt(var + eps)
    shift = beta_ref[...] - mean * scale
    for n in range(N):
        y_ref[n] = jnp.maximum(ys[n] * scale + shift, 0.0).astype(y_ref.dtype)


def conv1x1_bn_relu_pallas(x_nchw, wt, gamma2d, beta2d,
                           *, pad=0, eps=1e-5, compute_dtype=jnp.float32):
    if pad:
        # Rare config (1x1 conv with spatial padding).  TODO(synk): fold the halo
        # handling in-kernel; for now pad via XLA.
        x_nchw = jnp.pad(x_nchw, ((0, 0), (0, 0), (pad, pad), (pad, pad)))
    N, Cin, H, W = x_nchw.shape
    HW = H * W
    Cout = wt.shape[0]
    xf = x_nchw.reshape(N, Cin, HW)
    if xf.dtype != compute_dtype:
        xf = xf.astype(compute_dtype)
    y = pl.pallas_call(
        functools.partial(_conv1x1_bn_relu_kernel, eps=eps),
        out_shape=jax.ShapeDtypeStruct((N, Cout, HW), jnp.float32),
        grid=(1,),
        in_specs=[pl.BlockSpec((N, Cin, HW), lambda i: (0, 0, 0)),
                  pl.BlockSpec((Cout, Cin), lambda i: (0, 0)),
                  pl.BlockSpec((Cout, 1), lambda i: (0, 0)),
                  pl.BlockSpec((Cout, 1), lambda i: (0, 0))],
        out_specs=pl.BlockSpec((N, Cout, HW), lambda i: (0, 0, 0)),
        compiler_params=pltpu.CompilerParams(dimension_semantics=("arbitrary",)),
    )(xf, wt, gamma2d, beta2d)
    return y.reshape(N, Cout, H, W)


# --------------------------------------------------------------------------- #
# Module wrapper: parameters in HWIO (for the reference) + kernel-layout copies
# prepared once at init.  Consumes and produces NCHW like the PyTorch module.
# --------------------------------------------------------------------------- #
class BasicConv2d:
    def __init__(self, in_channels, out_channels, kernel_size=1, padding=0,
                 hid_channels=None, *, key, compute_dtype=jnp.float32):
        # compute_dtype: pass jnp.bfloat16 on v6e/v7x for MXU-native matmuls and
        # halved HBM operand traffic (accumulation stays f32; parity test here
        # keeps f32).
        self.kernel_size = kernel_size
        self.padding = padding
        self.compute_dtype = compute_dtype
        ks = jax.random.split(key, 6)
        if kernel_size < 2:
            self.w1 = 0.1 * jax.random.normal(
                ks[0], (1, 1, in_channels, out_channels), jnp.float32)
            self.b1 = 0.1 * jax.random.normal(ks[1], (out_channels,), jnp.float32)
            self.w2 = None
            self.b2 = None
            self._wt = jnp.transpose(self.w1[0, 0]).astype(compute_dtype)  # (Cout,Cin)
        else:
            self.w1 = 0.1 * jax.random.normal(
                ks[0], (1, kernel_size, in_channels, hid_channels), jnp.float32)
            self.b1 = 0.1 * jax.random.normal(ks[1], (hid_channels,), jnp.float32)
            self.w2 = 0.1 * jax.random.normal(
                ks[2], (kernel_size, 1, hid_channels, out_channels), jnp.float32)
            self.b2 = 0.1 * jax.random.normal(ks[3], (out_channels,), jnp.float32)
            # Kernel-layout weights (channels-as-rows matmuls), cast once at init:
            self._w1t = jnp.transpose(self.w1[0], (0, 2, 1)).astype(compute_dtype)
            self._w2t = jnp.transpose(self.w2[:, 0], (0, 2, 1)).astype(compute_dtype)
            self._b1c = self.b1.reshape(-1, 1)                     # f32 (Chid,1)
        self.gamma = 1.0 + 0.1 * jax.random.normal(ks[4], (out_channels,), jnp.float32)
        self.beta = 0.1 * jax.random.normal(ks[5], (out_channels,), jnp.float32)
        self._gamma2d = self.gamma.reshape(-1, 1)
        self._beta2d = self.beta.reshape(-1, 1)
        # NOTE: b2 (and the 1x1 bias) are created for parity with the PyTorch
        # module but never fed to the kernels -- a uniform per-channel bias
        # directly in front of train-mode BatchNorm is exactly cancelled.  If
        # eval-mode BN (running stats) is ever wanted, they must be re-added.

    def __call__(self, x_nchw):
        if self.kernel_size < 2:
            return conv1x1_bn_relu_pallas(
                x_nchw, self._wt, self._gamma2d, self._beta2d,
                pad=self.padding, compute_dtype=self.compute_dtype)
        return sep_conv_bn_relu_pallas(
            x_nchw, self._w1t, self._b1c, self._w2t, self._gamma2d, self._beta2d,
            K=self.kernel_size, pad=self.padding,
            compute_dtype=self.compute_dtype)


# --------------------------------------------------------------------------- #
# Pure-JAX reference (mirrors the PyTorch module exactly, biases included).
# --------------------------------------------------------------------------- #
def _reference(x_nchw, mod):
    x = jnp.transpose(x_nchw, (0, 2, 3, 1))

    def conv(x, w, b, ph, pw):
        y = jax.lax.conv_general_dilated(
            x, w, (1, 1), ((ph, ph), (pw, pw)),
            dimension_numbers=('NHWC', 'HWIO', 'NHWC'))
        return y + b

    if mod.kernel_size < 2:
        y = conv(x, mod.w1, mod.b1, mod.padding, mod.padding)
    else:
        y = conv(x, mod.w1, mod.b1, 0, mod.padding)
        y = conv(y, mod.w2, mod.b2, mod.padding, 0)
    mean = jnp.mean(y, axis=(0, 1, 2))
    var = jnp.var(y, axis=(0, 1, 2))
    y = (y - mean) * jax.lax.rsqrt(var + 1e-5) * mod.gamma + mod.beta
    y = jnp.maximum(y, 0.0)
    return jnp.transpose(y, (0, 3, 1, 2))


if __name__ == "__main__":
    key = jax.random.PRNGKey(0)
    kx, k1, k2 = jax.random.split(key, 3)
    x = jax.random.normal(kx, (2, 4, 16, 16), jnp.float32)   # NCHW, like PyTorch

    # Separable branch: Conv(1x3) -> Conv(3x1) -> BN -> ReLU, fully fused.
    mod3 = BasicConv2d(4, 8, kernel_size=3, padding=1, hid_channels=6, key=k1)
    out3 = jax.block_until_ready(mod3(x))
    np.testing.assert_allclose(np.asarray(out3), np.asarray(_reference(x, mod3)),
                               rtol=1e-3, atol=1e-3)

    # 1x1 branch: Conv(1x1) -> BN -> ReLU, fully fused.
    mod1 = BasicConv2d(4, 8, kernel_size=1, padding=0, key=k2)
    out1 = jax.block_until_ready(mod1(x))
    np.testing.assert_allclose(np.asarray(out1), np.asarray(_reference(x, mod1)),
                               rtol=1e-3, atol=1e-3)

    print("KERNEL_OK")
</pallas_src>

<mosaic_0001>
module attributes {stable_mosaic.version = 11 : i64} {
  func.func @_sep_conv_bn_relu_kernel(%arg0: i32, %arg1: memref<2x4x256xf32, #tpu.memory_space<vmem>>, %arg2: memref<3x6x4xf32, #tpu.memory_space<vmem>>, %arg3: memref<6x1xf32, #tpu.memory_space<vmem>>, %arg4: memref<3x8x6xf32, #tpu.memory_space<vmem>>, %arg5: memref<3x1x256xf32, #tpu.memory_space<vmem>>, %arg6: memref<3x1x256xf32, #tpu.memory_space<vmem>>, %arg7: memref<8x1xf32, #tpu.memory_space<vmem>>, %arg8: memref<8x1xf32, #tpu.memory_space<vmem>>, %arg9: memref<2x8x256xf32, #tpu.memory_space<vmem>>) attributes {dimension_semantics = [#tpu.dimension_semantics<arbitrary>], iteration_bounds = array<i64: 1>, scalar_prefetch = 0 : i64, scratch_operands = 0 : i64, tpu.core_type = #tpu.core_type<tc>, window_params = [{pipeline_mode = #tpu.pipeline_mode<synchronous>, transform_indices = @transform_0, window_bounds = array<i64: 2, 4, 256>}, {pipeline_mode = #tpu.pipeline_mode<synchronous>, transform_indices = @transform_1, window_bounds = array<i64: 3, 6, 4>}, {pipeline_mode = #tpu.pipeline_mode<synchronous>, transform_indices = @transform_2, window_bounds = array<i64: 6, 1>}, {pipeline_mode = #tpu.pipeline_mode<synchronous>, transform_indices = @transform_3, window_bounds = array<i64: 3, 8, 6>}, {pipeline_mode = #tpu.pipeline_mode<synchronous>, transform_indices = @transform_4, window_bounds = array<i64: 3, 1, 256>}, {pipeline_mode = #tpu.pipeline_mode<synchronous>, transform_indices = @transform_5, window_bounds = array<i64: 3, 1, 256>}, {pipeline_mode = #tpu.pipeline_mode<synchronous>, transform_indices = @transform_6, window_bounds = array<i64: 8, 1>}, {pipeline_mode = #tpu.pipeline_mode<synchronous>, transform_indices = @transform_7, window_bounds = array<i64: 8, 1>}, {pipeline_mode = #tpu.pipeline_mode<synchronous>, transform_indices = @transform_8, window_bounds = array<i64: 2, 8, 256>}]} {
    %c0 = arith.constant 0 : index
    %c0_0 = arith.constant 0 : index
    %c0_1 = arith.constant 0 : index
    %0 = vector.load %arg1[%c0, %c0_0, %c0_1] : memref<2x4x256xf32, #tpu.memory_space<vmem>>, vector<1x4x256xf32>
    %1 = vector.shape_cast %0 : vector<1x4x256xf32> to vector<4x256xf32>
    %cst = arith.constant 0.000000e+00 : f32
    %2 = vector.broadcast %cst : f32 to vector<6x256xf32>
    %c1_i32 = arith.constant 1 : i32
    %3 = tpu.dynamic_rotate %1 by %c1_i32 dim 1 : vector<4x256xf32>, i32 -> vector<4x256xf32>
    %c0_2 = arith.constant 0 : index
    %c0_3 = arith.constant 0 : index
    %c0_4 = arith.constant 0 : index
    %4 = vector.load %arg5[%c0_2, %c0_3, %c0_4] : memref<3x1x256xf32, #tpu.memory_space<vmem>>, vector<1x1x256xf32>
    %5 = vector.shape_cast %4 : vector<1x1x256xf32> to vector<1x256xf32>
    %6 = vector.broadcast %5 : vector<1x256xf32> to vector<4x256xf32>
    %7 = arith.mulf %3, %6 : vector<4x256xf32>
    %c0_5 = arith.constant 0 : index
    %c0_6 = arith.constant 0 : index
    %c0_7 = arith.constant 0 : index
    %8 = vector.load %arg2[%c0_5, %c0_6, %c0_7] : memref<3x6x4xf32, #tpu.memory_space<vmem>>, vector<1x6x4xf32>
    %9 = vector.shape_cast %8 : vector<1x6x4xf32> to vector<6x4xf32>
    %cst_8 = arith.constant dense<0.000000e+00> : vector<6x256xf32>
    %10 = tpu.matmul %9, %7, %cst_8 {dimension_numbers = #tpu.dot_dimension_numbers<[1], [0], [0], [1], [0, 0, 1, 1], [], []>} : vector<6x4xf32>, vector<4x256xf32>, vector<6x256xf32> -> vector<6x256xf32>
    %11 = arith.addf %2, %10 : vector<6x256xf32>
    %c1 = arith.constant 1 : index
    %c0_9 = arith.constant 0 : index
    %c0_10 = arith.constant 0 : index
    %12 = vector.load %arg2[%c1, %c0_9, %c0_10] : memref<3x6x4xf32, #tpu.memory_space<vmem>>, vector<1x6x4xf32>
    %13 = vector.shape_cast %12 : vector<1x6x4xf32> to vector<6x4xf32>
    %cst_11 = arith.constant dense<0.000000e+00> : vector<6x256xf32>
    %14 = tpu.matmul %13, %1, %cst_11 {dimension_numbers = #tpu.dot_dimension_numbers<[1], [0], [0], [1], [0, 0, 1, 1], [], []>} : vector<6x4xf32>, vector<4x256xf32>, vector<6x256xf32> -> vector<6x256xf32>
    %15 = arith.addf %11, %14 : vector<6x256xf32>
    %c255_i32 = arith.constant 255 : i32
    %16 = tpu.dynamic_rotate %1 by %c255_i32 dim 1 : vector<4x256xf32>, i32 -> vector<4x256xf32>
    %c2 = arith.constant 2 : index
    %c0_12 = arith.constant 0 : index
    %c0_13 = arith.constant 0 : index
    %17 = vector.load %arg5[%c2, %c0_12, %c0_13] : memref<3x1x256xf32, #tpu.memory_space<vmem>>, vector<1x1x256xf32>
    %18 = vector.shape_cast %17 : vector<1x1x256xf32> to vector<1x256xf32>
    %19 = vector.broadcast %18 : vector<1x256xf32> to vector<4x256xf32>
    %20 = arith.mulf %16, %19 : vector<4x256xf32>
    %c2_14 = arith.constant 2 : index
    %c0_15 = arith.constant 0 : index
    %c0_16 = arith.constant 0 : index
    %21 = vector.load %arg2[%c2_14, %c0_15, %c0_16] : memref<3x6x4xf32, #tpu.memory_space<vmem>>, vector<1x6x4xf32>
    %22 = vector.shape_cast %21 : vector<1x6x4xf32> to vector<6x4xf32>
    %cst_17 = arith.constant dense<0.000000e+00> : vector<6x256xf32>
    %23 = tpu.matmul %22, %20, %cst_17 {dimension_numbers = #tpu.dot_dimension_numbers<[1], [0], [0], [1], [0, 0, 1, 1], [], []>} : vector<6x4xf32>, vector<4x256xf32>, vector<6x256xf32> -> vector<6x256xf32>
    %24 = arith.addf %15, %23 : vector<6x256xf32>
    %c0_18 = arith.constant 0 : index
    %c0_19 = arith.constant 0 : index
    %25 = vector.load %arg3[%c0_18, %c0_19] : memref<6x1xf32, #tpu.memory_space<vmem>>, vector<6x1xf32>
    %26 = vector.broadcast %25 : vector<6x1xf32> to vector<6x256xf32>
    %27 = arith.addf %24, %26 : vector<6x256xf32>
    %cst_20 = arith.constant 0.000000e+00 : f32
    %28 = vector.broadcast %cst_20 : f32 to vector<8x256xf32>
    %c16_i32 = arith.constant 16 : i32
    %29 = tpu.dynamic_rotate %27 by %c16_i32 dim 1 : vector<6x256xf32>, i32 -> vector<6x256xf32>
    %c0_21 = arith.constant 0 : index
    %c0_22 = arith.constant 0 : index
    %c0_23 = arith.constant 0 : index
    %30 = vector.load %arg6[%c0_21, %c0_22, %c0_23] : memref<3x1x256xf32, #tpu.memory_space<vmem>>, vector<1x1x256xf32>
    %31 = vector.shape_cast %30 : vector<1x1x256xf32> to vector<1x256xf32>
    %32 = vector.broadcast %31 : vector<1x256xf32> to vector<6x256xf32>
    %33 = arith.mulf %29, %32 : vector<6x256xf32>
    %c0_24 = arith.constant 0 : index
    %c0_25 = arith.constant 0 : index
    %c0_26 = arith.constant 0 : index
    %34 = vector.load %arg4[%c0_24, %c0_25, %c0_26] : memref<3x8x6xf32, #tpu.memory_space<vmem>>, vector<1x8x6xf32>
    %35 = vector.shape_cast %34 : vector<1x8x6xf32> to vector<8x6xf32>
    %cst_27 = arith.constant dense<0.000000e+00> : vector<8x256xf32>
    %36 = tpu.matmul %35, %33, %cst_27 {dimension_numbers = #tpu.dot_dimension_numbers<[1], [0], [0], [1], [0, 0, 1, 1], [], []>} : vector<8x6xf32>, vector<6x256xf32>, vector<8x256xf32> -> vector<8x256xf32>
    %37 = arith.addf %28, %36 : vector<8x256xf32>
    %c1_28 = arith.constant 1 : index
    %c0_29 = arith.constant 0 : index
    %c0_30 = arith.constant 0 : index
    %38 = vector.load %arg4[%c1_28, %c0_29, %c0_30] : memref<3x8x6xf32, #tpu.memory_space<vmem>>, vector<1x8x6xf32>
    %39 = vector.shape_cast %38 : vector<1x8x6xf32> to vector<8x6xf32>
    %cst_31 = arith.constant dense<0.000000e+00> : vector<8x256xf32>
    %40 = tpu.matmul %39, %27, %cst_31 {dimension_numbers = #tpu.dot_dimension_numbers<[1], [0], [0], [1], [0, 0, 1, 1], [], []>} : vector<8x6xf32>, vector<6x256xf32>, vector<8x256xf32> -> vector<8x256xf32>
    %41 = arith.addf %37, %40 : vector<8x256xf32>
    %c240_i32 = arith.constant 240 : i32
    %42 = tpu.dynamic_rotate %27 by %c240_i32 dim 1 : vector<6x256xf32>, i32 -> vector<6x256xf32>
    %c2_32 = arith.constant 2 : index
    %c0_33 = arith.constant 0 : index
    %c0_34 = arith.constant 0 : index
    %43 = vector.load %arg6[%c2_32, %c0_33, %c0_34] : memref<3x1x256xf32, #tpu.memory_space<vmem>>, vector<1x1x256xf32>
    %44 = vector.shape_cast %43 : vector<1x1x256xf32> to vector<1x256xf32>
    %45 = vector.broadcast %44 : vector<1x256xf32> to vector<6x256xf32>
    %46 = arith.mulf %42, %45 : vector<6x256xf32>
    %c2_35 = arith.constant 2 : index
    %c0_36 = arith.constant 0 : index
    %c0_37 = arith.constant 0 : index
    %47 = vector.load %arg4[%c2_35, %c0_36, %c0_37] : memref<3x8x6xf32, #tpu.memory_space<vmem>>, vector<1x8x6xf32>
    %48 = vector.shape_cast %47 : vector<1x8x6xf32> to vector<8x6xf32>
    %cst_38 = arith.constant dense<0.000000e+00> : vector<8x256xf32>
    %49 = tpu.matmul %48, %46, %cst_38 {dimension_numbers = #tpu.dot_dimension_numbers<[1], [0], [0], [1], [0, 0, 1, 1], [], []>} : vector<8x6xf32>, vector<6x256xf32>, vector<8x256xf32> -> vector<8x256xf32>
    %50 = arith.addf %41, %49 : vector<8x256xf32>
    %c1_39 = arith.constant 1 : index
    %c0_40 = arith.constant 0 : index
    %c0_41 = arith.constant 0 : index
    %51 = vector.load %arg1[%c1_39, %c0_40, %c0_41] : memref<2x4x256xf32, #tpu.memory_space<vmem>>, vector<1x4x256xf32>
    %52 = vector.shape_cast %51 : vector<1x4x256xf32> to vector<4x256xf32>
    %cst_42 = arith.constant 0.000000e+00 : f32
    %53 = vector.broadcast %cst_42 : f32 to vector<6x256xf32>
    %c1_i32_43 = arith.constant 1 : i32
    %54 = tpu.dynamic_rotate %52 by %c1_i32_43 dim 1 : vector<4x256xf32>, i32 -> vector<4x256xf32>
    %c0_44 = arith.constant 0 : index
    %c0_45 = arith.constant 0 : index
    %c0_46 = arith.constant 0 : index
    %55 = vector.load %arg5[%c0_44, %c0_45, %c0_46] : memref<3x1x256xf32, #tpu.memory_space<vmem>>, vector<1x1x256xf32>
    %56 = vector.shape_cast %55 : vector<1x1x256xf32> to vector<1x256xf32>
    %57 = vector.broadcast %56 : vector<1x256xf32> to vector<4x256xf32>
    %58 = arith.mulf %54, %57 : vector<4x256xf32>
    %c0_47 = arith.constant 0 : index
    %c0_48 = arith.constant 0 : index
    %c0_49 = arith.constant 0 : index
    %59 = vector.load %arg2[%c0_47, %c0_48, %c0_49] : memref<3x6x4xf32, #tpu.memory_space<vmem>>, vector<1x6x4xf32>
    %60 = vector.shape_cast %59 : vector<1x6x4xf32> to vector<6x4xf32>
    %cst_50 = arith.constant dense<0.000000e+00> : vector<6x256xf32>
    %61 = tpu.matmul %60, %58, %cst_50 {dimension_numbers = #tpu.dot_dimension_numbers<[1], [0], [0], [1], [0, 0, 1, 1], [], []>} : vector<6x4xf32>, vector<4x256xf32>, vector<6x256xf32> -> vector<6x256xf32>
    %62 = arith.addf %53, %61 : vector<6x256xf32>
    %c1_51 = arith.constant 1 : index
    %c0_52 = arith.constant 0 : index
    %c0_53 = arith.constant 0 : index
    %63 = vector.load %arg2[%c1_51, %c0_52, %c0_53] : memref<3x6x4xf32, #tpu.memory_space<vmem>>, vector<1x6x4xf32>
    %64 = vector.shape_cast %63 : vector<1x6x4xf32> to vector<6x4xf32>
    %cst_54 = arith.constant dense<0.000000e+00> : vector<6x256xf32>
    %65 = tpu.matmul %64, %52, %cst_54 {dimension_numbers = #tpu.dot_dimension_numbers<[1], [0], [0], [1], [0, 0, 1, 1], [], []>} : vector<6x4xf32>, vector<4x256xf32>, vector<6x256xf32> -> vector<6x256xf32>
    %66 = arith.addf %62, %65 : vector<6x256xf32>
    %c255_i32_55 = arith.constant 255 : i32
    %67 = tpu.dynamic_rotate %52 by %c255_i32_55 dim 1 : vector<4x256xf32>, i32 -> vector<4x256xf32>
    %c2_56 = arith.constant 2 : index
    %c0_57 = arith.constant 0 : index
    %c0_58 = arith.constant 0 : index
    %68 = vector.load %arg5[%c2_56, %c0_57, %c0_58] : memref<3x1x256xf32, #tpu.memory_space<vmem>>, vector<1x1x256xf32>
    %69 = vector.shape_cast %68 : vector<1x1x256xf32> to vector<1x256xf32>
    %70 = vector.broadcast %69 : vector<1x256xf32> to vector<4x256xf32>
    %71 = arith.mulf %67, %70 : vector<4x256xf32>
    %c2_59 = arith.constant 2 : index
    %c0_60 = arith.constant 0 : index
    %c0_61 = arith.constant 0 : index
    %72 = vector.load %arg2[%c2_59, %c0_60, %c0_61] : memref<3x6x4xf32, #tpu.memory_space<vmem>>, vector<1x6x4xf32>
    %73 = vector.shape_cast %72 : vector<1x6x4xf32> to vector<6x4xf32>
    %cst_62 = arith.constant dense<0.000000e+00> : vector<6x256xf32>
    %74 = tpu.matmul %73, %71, %cst_62 {dimension_numbers = #tpu.dot_dimension_numbers<[1], [0], [0], [1], [0, 0, 1, 1], [], []>} : vector<6x4xf32>, vector<4x256xf32>, vector<6x256xf32> -> vector<6x256xf32>
    %75 = arith.addf %66, %74 : vector<6x256xf32>
    %c0_63 = arith.constant 0 : index
    %c0_64 = arith.constant 0 : index
    %76 = vector.load %arg3[%c0_63, %c0_64] : memref<6x1xf32, #tpu.memory_space<vmem>>, vector<6x1xf32>
    %77 = vector.broadcast %76 : vector<6x1xf32> to vector<6x256xf32>
    %78 = arith.addf %75, %77 : vector<6x256xf32>
    %cst_65 = arith.constant 0.000000e+00 : f32
    %79 = vector.broadcast %cst_65 : f32 to vector<8x256xf32>
    %c16_i32_66 = arith.constant 16 : i32
    %80 = tpu.dynamic_rotate %78 by %c16_i32_66 dim 1 : vector<6x256xf32>, i32 -> vector<6x256xf32>
    %c0_67 = arith.constant 0 : index
    %c0_68 = arith.constant 0 : index
    %c0_69 = arith.constant 0 : index
    %81 = vector.load %arg6[%c0_67, %c0_68, %c0_69] : memref<3x1x256xf32, #tpu.memory_space<vmem>>, vector<1x1x256xf32>
    %82 = vector.shape_cast %81 : vector<1x1x256xf32> to vector<1x256xf32>
    %83 = vector.broadcast %82 : vector<1x256xf32> to vector<6x256xf32>
    %84 = arith.mulf %80, %83 : vector<6x256xf32>
    %c0_70 = arith.constant 0 : index
    %c0_71 = arith.constant 0 : index
    %c0_72 = arith.constant 0 : index
    %85 = vector.load %arg4[%c0_70, %c0_71, %c0_72] : memref<3x8x6xf32, #tpu.memory_space<vmem>>, vector<1x8x6xf32>
    %86 = vector.shape_cast %85 : vector<1x8x6xf32> to vector<8x6xf32>
    %cst_73 = arith.constant dense<0.000000e+00> : vector<8x256xf32>
    %87 = tpu.matmul %86, %84, %cst_73 {dimension_numbers = #tpu.dot_dimension_numbers<[1], [0], [0], [1], [0, 0, 1, 1], [], []>} : vector<8x6xf32>, vector<6x256xf32>, vector<8x256xf32> -> vector<8x256xf32>
    %88 = arith.addf %79, %87 : vector<8x256xf32>
    %c1_74 = arith.constant 1 : index
    %c0_75 = arith.constant 0 : index
    %c0_76 = arith.constant 0 : index
    %89 = vector.load %arg4[%c1_74, %c0_75, %c0_76] : memref<3x8x6xf32, #tpu.memory_space<vmem>>, vector<1x8x6xf32>
    %90 = vector.shape_cast %89 : vector<1x8x6xf32> to vector<8x6xf32>
    %cst_77 = arith.constant dense<0.000000e+00> : vector<8x256xf32>
    %91 = tpu.matmul %90, %78, %cst_77 {dimension_numbers = #tpu.dot_dimension_numbers<[1], [0], [0], [1], [0, 0, 1, 1], [], []>} : vector<8x6xf32>, vector<6x256xf32>, vector<8x256xf32> -> vector<8x256xf32>
    %92 = arith.addf %88, %91 : vector<8x256xf32>
    %c240_i32_78 = arith.constant 240 : i32
    %93 = tpu.dynamic_rotate %78 by %c240_i32_78 dim 1 : vector<6x256xf32>, i32 -> vector<6x256xf32>
    %c2_79 = arith.constant 2 : index
    %c0_80 = arith.constant 0 : index
    %c0_81 = arith.constant 0 : index
    %94 = vector.load %arg6[%c2_79, %c0_80, %c0_81] : memref<3x1x256xf32, #tpu.memory_space<vmem>>, vector<1x1x256xf32>
    %95 = vector.shape_cast %94 : vector<1x1x256xf32> to vector<1x256xf32>
    %96 = vector.broadcast %95 : vector<1x256xf32> to vector<6x256xf32>
    %97 = arith.mulf %93, %96 : vector<6x256xf32>
    %c2_82 = arith.constant 2 : index
    %c0_83 = arith.constant 0 : index
    %c0_84 = arith.constant 0 : index
    %98 = vector.load %arg4[%c2_82, %c0_83, %c0_84] : memref<3x8x6xf32, #tpu.memory_space<vmem>>, vector<1x8x6xf32>
    %99 = vector.shape_cast %98 : vector<1x8x6xf32> to vector<8x6xf32>
    %cst_85 = arith.constant dense<0.000000e+00> : vector<8x256xf32>
    %100 = tpu.matmul %99, %97, %cst_85 {dimension_numbers = #tpu.dot_dimension_numbers<[1], [0], [0], [1], [0, 0, 1, 1], [], []>} : vector<8x6xf32>, vector<6x256xf32>, vector<8x256xf32> -> vector<8x256xf32>
    %101 = arith.addf %92, %100 : vector<8x256xf32>
    %cst_86 = arith.constant dense<0.000000e+00> : vector<8xf32>
    %102 = vector.multi_reduction <add>, %50, %cst_86 [1] : vector<8x256xf32> to vector<8xf32>
    %103 = vector.shape_cast %102 : vector<8xf32> to vector<8x1xf32>
    %cst_87 = arith.constant dense<0.000000e+00> : vector<8xf32>
    %104 = vector.multi_reduction <add>, %101, %cst_87 [1] : vector<8x256xf32> to vector<8xf32>
    %105 = vector.shape_cast %104 : vector<8xf32> to vector<8x1xf32>
    %106 = arith.addf %103, %105 : vector<8x1xf32>
    %cst_88 = arith.constant 0.001953125 : f32
    %107 = vector.broadcast %cst_88 : f32 to vector<8x1xf32>
    %108 = arith.mulf %106, %107 : vector<8x1xf32>
    %cst_89 = arith.constant 0.000000e+00 : f32
    %109 = vector.broadcast %cst_89 : f32 to vector<8x1xf32>
    %110 = vector.broadcast %108 : vector<8x1xf32> to vector<8x256xf32>
    %111 = arith.subf %50, %110 : vector<8x256xf32>
    %112 = arith.mulf %111, %111 : vector<8x256xf32>
    %cst_90 = arith.constant dense<0.000000e+00> : vector<8xf32>
    %113 = vector.multi_reduction <add>, %112, %cst_90 [1] : vector<8x256xf32> to vector<8xf32>
    %114 = vector.shape_cast %113 : vector<8xf32> to vector<8x1xf32>
    %115 = arith.addf %109, %114 : vector<8x1xf32>
    %116 = vector.broadcast %108 : vector<8x1xf32> to vector<8x256xf32>
    %117 = arith.subf %101, %116 : vector<8x256xf32>
    %118 = arith.mulf %117, %117 : vector<8x256xf32>
    %cst_91 = arith.constant dense<0.000000e+00> : vector<8xf32>
    %119 = vector.multi_reduction <add>, %118, %cst_91 [1] : vector<8x256xf32> to vector<8xf32>
    %120 = vector.shape_cast %119 : vector<8xf32> to vector<8x1xf32>
    %121 = arith.addf %115, %120 : vector<8x1xf32>
    %cst_92 = arith.constant 0.001953125 : f32
    %122 = vector.broadcast %cst_92 : f32 to vector<8x1xf32>
    %123 = arith.mulf %121, %122 : vector<8x1xf32>
    %c0_93 = arith.constant 0 : index
    %c0_94 = arith.constant 0 : index
    %124 = vector.load %arg7[%c0_93, %c0_94] : memref<8x1xf32, #tpu.memory_space<vmem>>, vector<8x1xf32>
    %cst_95 = arith.constant 9.99999974E-6 : f32
    %125 = vector.broadcast %cst_95 : f32 to vector<8x1xf32>
    %126 = arith.addf %123, %125 : vector<8x1xf32>
    %127 = math.rsqrt %126 : vector<8x1xf32>
    %128 = arith.mulf %124, %127 : vector<8x1xf32>
    %c0_96 = arith.constant 0 : index
    %c0_97 = arith.constant 0 : index
    %129 = vector.load %arg8[%c0_96, %c0_97] : memref<8x1xf32, #tpu.memory_space<vmem>>, vector<8x1xf32>
    %130 = arith.mulf %108, %128 : vector<8x1xf32>
    %131 = arith.subf %129, %130 : vector<8x1xf32>
    %132 = vector.broadcast %128 : vector<8x1xf32> to vector<8x256xf32>
    %133 = arith.mulf %50, %132 : vector<8x256xf32>
    %134 = vector.broadcast %131 : vector<8x1xf32> to vector<8x256xf32>
    %135 = arith.addf %133, %134 : vector<8x256xf32>
    %cst_98 = arith.constant 0.000000e+00 : f32
    %136 = vector.broadcast %cst_98 : f32 to vector<8x256xf32>
    %137 = arith.maximumf %135, %136 : vector<8x256xf32>
    %c0_99 = arith.constant 0 : index
    %c0_100 = arith.constant 0 : index
    %c0_101 = arith.constant 0 : index
    %138 = vector.load %arg9[%c0_99, %c0_100, %c0_101] : memref<2x8x256xf32, #tpu.memory_space<vmem>>, vector<1x8x256xf32>
    %139 = vector.shape_cast %138 : vector<1x8x256xf32> to vector<8x256xf32>
    %140 = vector.shape_cast %137 : vector<8x256xf32> to vector<1x8x256xf32>
    tpu.vector_store %arg9[%c0_99, %c0_100, %c0_101], %140 {strides = array<i32>} : memref<2x8x256xf32, #tpu.memory_space<vmem>>, vector<1x8x256xf32>,
    %141 = vector.broadcast %128 : vector<8x1xf32> to vector<8x256xf32>
    %142 = arith.mulf %101, %141 : vector<8x256xf32>
    %143 = vector.broadcast %131 : vector<8x1xf32> to vector<8x256xf32>
    %144 = arith.addf %142, %143 : vector<8x256xf32>
    %cst_102 = arith.constant 0.000000e+00 : f32
    %145 = vector.broadcast %cst_102 : f32 to vector<8x256xf32>
    %146 = arith.maximumf %144, %145 : vector<8x256xf32>
    %c1_103 = arith.constant 1 : index
    %c0_104 = arith.constant 0 : index
    %c0_105 = arith.constant 0 : index
    %147 = vector.load %arg9[%c1_103, %c0_104, %c0_105] : memref<2x8x256xf32, #tpu.memory_space<vmem>>, vector<1x8x256xf32>
    %148 = vector.shape_cast %147 : vector<1x8x256xf32> to vector<8x256xf32>
    %149 = vector.shape_cast %146 : vector<8x256xf32> to vector<1x8x256xf32>
    tpu.vector_store %arg9[%c1_103, %c0_104, %c0_105], %149 {strides = array<i32>} : memref<2x8x256xf32, #tpu.memory_space<vmem>>, vector<1x8x256xf32>,
    return
  }
  func.func @transform_0(%arg0: i32) -> (i32, i32, i32) {
    %c0_i32 = arith.constant 0 : i32
    %c0_i32_0 = arith.constant 0 : i32
    %c0_i32_1 = arith.constant 0 : i32
    %c0_i32_2 = arith.constant 0 : i32
    return %c0_i32, %c0_i32_0, %c0_i32_1 : i32, i32, i32
  }
  func.func @transform_1(%arg0: i32) -> (i32, i32, i32) {
    %c0_i32 = arith.constant 0 : i32
    %c0_i32_0 = arith.constant 0 : i32
    %c0_i32_1 = arith.constant 0 : i32
    %c0_i32_2 = arith.constant 0 : i32
    return %c0_i32, %c0_i32_0, %c0_i32_1 : i32, i32, i32
  }
  func.func @transform_2(%arg0: i32) -> (i32, i32) {
    %c0_i32 = arith.constant 0 : i32
    %c0_i32_0 = arith.constant 0 : i32
    %c0_i32_1 = arith.constant 0 : i32
    return %c0_i32, %c0_i32_0 : i32, i32
  }
  func.func @transform_3(%arg0: i32) -> (i32, i32, i32) {
    %c0_i32 = arith.constant 0 : i32
    %c0_i32_0 = arith.constant 0 : i32
    %c0_i32_1 = arith.constant 0 : i32
    %c0_i32_2 = arith.constant 0 : i32
    return %c0_i32, %c0_i32_0, %c0_i32_1 : i32, i32, i32
  }
  func.func @transform_4(%arg0: i32) -> (i32, i32, i32) {
    %c0_i32 = arith.constant 0 : i32
    %c0_i32_0 = arith.constant 0 : i32
    %c0_i32_1 = arith.constant 0 : i32
    %c0_i32_2 = arith.constant 0 : i32
    return %c0_i32, %c0_i32_0, %c0_i32_1 : i32, i32, i32
  }
  func.func @transform_5(%arg0: i32) -> (i32, i32, i32) {
    %c0_i32 = arith.constant 0 : i32
    %c0_i32_0 = arith.constant 0 : i32
    %c0_i32_1 = arith.constant 0 : i32
    %c0_i32_2 = arith.constant 0 : i32
    return %c0_i32, %c0_i32_0, %c0_i32_1 : i32, i32, i32
  }
  func.func @transform_6(%arg0: i32) -> (i32, i32) {
    %c0_i32 = arith.constant 0 : i32
    %c0_i32_0 = arith.constant 0 : i32
    %c0_i32_1 = arith.constant 0 : i32
    return %c0_i32, %c0_i32_0 : i32, i32
  }
  func.func @transform_7(%arg0: i32) -> (i32, i32) {
    %c0_i32 = arith.constant 0 : i32
    %c0_i32_0 = arith.constant 0 : i32
    %c0_i32_1 = arith.constant 0 : i32
    return %c0_i32, %c0_i32_0 : i32, i32
  }
  func.func @transform_8(%arg0: i32) -> (i32, i32, i32) {
    %c0_i32 = arith.constant 0 : i32
    %c0_i32_0 = arith.constant 0 : i32
    %c0_i32_1 = arith.constant 0 : i32
    %c0_i32_2 = arith.constant 0 : i32
    return %c0_i32, %c0_i32_0, %c0_i32_1 : i32, i32, i32
  }
}

</mosaic_0001>

<llo_original>
// kernel: tpu_custom_call.1
$region0: #{tpu_custom_call.1}
  #allocation0 [shape = 'u32[]', space=smem, size = 0x4, offset = 0x4, fixed_abs, tag = 'smem constant byte address 0x4 - core index']
  #allocation1 [shape = 'u32[72,128]{1,0:T(1,128)}', space=vmem, size = 0x9000, scoped, tag = 'internal scratch']
  %s0 = inlined_call_operand.vmem [shape: f32[2,4,256], index: 0, kind: input, shape index: {}]
  %s1 = inlined_call_operand.vmem [shape: f32[3,6,4], index: 1, kind: input, shape index: {}]
  %s2 = inlined_call_operand.vmem [shape: f32[6,1], index: 2, kind: input, shape index: {}]
  %s3 = inlined_call_operand.vmem [shape: f32[3,8,6], index: 3, kind: input, shape index: {}]
  %s4 = inlined_call_operand.vmem [shape: f32[3,1,256], index: 4, kind: input, shape index: {}]
  %s5 = inlined_call_operand.hbm [shape: f32[3,1,256], index: 5, kind: input, shape index: {}]
  %s6 = inlined_call_operand.vmem [shape: f32[8,1], index: 6, kind: input, shape index: {}]
  %s7 = inlined_call_operand.vmem [shape: f32[8,1], index: 7, kind: input, shape index: {}]
  %s8 = inlined_call_operand.hbm [shape: f32[2,8,256], index: 8, kind: output, shape index: {}]
  %s9 = sld [smem:[#allocation0]]
  $region46: #{tpu_custom_call.1} parent=0
    _
  %s11 = ssub.s32 1, %s9
  %s12 = scalar_select 0, %s11, %s9
  $region1: #{tpu_custom_call.1} parent=0
    #allocation2 [shape = 'u8[3072]{0}', space=vmem, size = 0xc00, scoped, tag = 'input window, operand 5, single buffered']
    #allocation3 [shape = 's32[1]{0}', space=sflag, size = 0x4, scoped, tag = 'scoped memory for tpu_custom_call.1']
    #allocation4 [shape = 's32[1]{0}', space=sflag, size = 0x4, scoped, tag = 'scoped memory for tpu_custom_call.1']
    #allocation5 [shape = 'u8[16384]{0}', space=vmem, size = 0x4000, scoped, tag = 'output window, operand 0, single buffered']
    %13 = vsyncpa [#allocation3], 0
    %14 = vsyncpa [#allocation4], 0
    // Predicated region
    $region2: #{tpu_custom_call.1} parent=1 // pred_check
      _
    $region3: #{tpu_custom_call.1} parent=1 // pred_check_branch
      %16 = sbr.rel (0) target = $region5
    $region4: #{tpu_custom_call.1} parent=1 // pred_region
      _
    $region5: #{tpu_custom_call.1} parent=1 // pred_fallthru
      _
    // Predicated region
    $region6: #{tpu_custom_call.1} parent=1 // pred_check
      _
    $region7: #{tpu_custom_call.1} parent=1 // pred_check_branch
      %18 = sbr.rel (0) target = $region9
    $region8: #{tpu_custom_call.1} parent=1 // pred_region
      _
    $region9: #{tpu_custom_call.1} parent=1 // pred_fallthru
      _
    // Predicated region
    $region10: #{tpu_custom_call.1} parent=1 // pred_check
      _
    $region11: #{tpu_custom_call.1} parent=1 // pred_check_branch
      %20 = sbr.rel (0) target = $region13
    $region12: #{tpu_custom_call.1} parent=1 // pred_region
      _
    $region13: #{tpu_custom_call.1} parent=1 // pred_fallthru
      _
    // Predicated region
    $region14: #{tpu_custom_call.1} parent=1 // pred_check
      _
    $region15: #{tpu_custom_call.1} parent=1 // pred_check_branch
      %22 = sbr.rel (0) target = $region17
    $region16: #{tpu_custom_call.1} parent=1 // pred_region
      _
    $region17: #{tpu_custom_call.1} parent=1 // pred_fallthru
      _
    // Predicated region
    $region18: #{tpu_custom_call.1} parent=1 // pred_check
      _
    $region19: #{tpu_custom_call.1} parent=1 // pred_check_branch
      %24 = sbr.rel (0) target = $region21
    $region20: #{tpu_custom_call.1} parent=1 // pred_region
      _
    $region21: #{tpu_custom_call.1} parent=1 // pred_fallthru
      _
    // Predicated region
    $region22: #{tpu_custom_call.1} parent=1 // pred_check
      _
    $region23: #{tpu_custom_call.1} parent=1 // pred_check_branch
      %26 = sbr.rel (0) target = $region25
    $region24: #{tpu_custom_call.1} parent=1 // pred_region
      %28 = vsyncadd [#allocation3], 0
      %s29 = sshll.u32 %s5, 4
      %s30 = int_to_ptr.hbm [resolvable:$true] %s29
      %s31 = sshll.u32 [#allocation2], 4
      %s32 = int_to_ptr.vmem [resolvable:$true] %s31
      %37 = dma.hbm_to_vmem [thread:$0]  %s30, 96, %s32, [#allocation3], 32, 32, 2
    $region25: #{tpu_custom_call.1} parent=1 // pred_fallthru
      _
    // Predicated region
    $region26: #{tpu_custom_call.1} parent=1 // pred_check
      _
    $region27: #{tpu_custom_call.1} parent=1 // pred_check_branch
      %39 = sbr.rel (0) target = $region29
    $region28: #{tpu_custom_call.1} parent=1 // pred_region
      _
    $region29: #{tpu_custom_call.1} parent=1 // pred_fallthru
      _
    // Predicated region
    $region30: #{tpu_custom_call.1} parent=1 // pred_check
      _
    $region31: #{tpu_custom_call.1} parent=1 // pred_check_branch
      %41 = sbr.rel (0) target = $region33
    $region32: #{tpu_custom_call.1} parent=1 // pred_region
      _
    $region33: #{tpu_custom_call.1} parent=1 // pred_fallthru
      _
    // Predicated region
    $region34: #{tpu_custom_call.1} parent=1 // pred_check
      _
    $region35: #{tpu_custom_call.1} parent=1 // pred_check_branch
      %43 = sbr.rel (0) target = $region37
    $region36: #{tpu_custom_call.1} parent=1 // pred_region
      %45 = dma.done [#allocation3], 96
    $region37: #{tpu_custom_call.1} parent=1 // pred_fallthru
      _
    %v46 = vld [vmem:[%s0] sm:$0xff]
    %48 = vst [vmem:[#allocation1] ss:$2 sm:$0xff] %v46
    %v49 = vld.sshfl [vmem:[#allocation1] sm:$0xff pattern:$0x75316420]
    %v50 = vld.sshfl [vmem:[#allocation1 + $0x8] sm:$0xff pattern:$0x75316420]
    %53 = vrot.lane.b32.xlu0 %v49, 1
    %v54 = vpop.permute.xlu0 %53
    %55 = vrot.lane.b32.xlu0 %v50, 1
    %v56 = vpop.permute.xlu0 %55
    %v57 = vlaneseq
    %v58 = vand.u32 %v57, 127
    %vm59 = vcmp.lt.s32.totalorder %v58, 1
    %v60 = vsel %vm59, %v54, %v56
    %v61 = vsel %vm59, %v56, %v54
    %v62 = vld [vmem:[%s4] sm:$0x3]
    %v64 = vperm.slane %v62, 0
    %v65 = vperm.slane %v62, 1
    %v68 = vmul.f32 %v61, %v64
    %v69 = vmul.f32 %v60, %v65
    %v70 = vld [vmem:[%s1] sm:$0x3f]
    %s71 = scalar_lea.vmem %s1, 8
    %v72 = vld [vmem:[%s71] sm:$0x3f]
    %73 = vst [vmem:[#allocation1] ss:$2 sm:$0xff] %v46
    %v74 = vld.sshfl [vmem:[#allocation1] sm:$0xff pattern:$0x75316420]
    %v75 = vld.sshfl [vmem:[#allocation1 + $0x8] sm:$0xff pattern:$0x75316420]
    %vm76 = vcmask 31744
    %v78 = vsel %vm76, %v72, 0
    %vm80 = vcmask 1043456
    %v81 = vsel %vm80, %v74, 0
    %v83 = vsel %vm80, %v75, 0
    %85 = vmatpush.msra.mxu0 0.0
    %86 = vmatpush.msra.mxu0 0.0
    %87 = vmatpush.msra.mxu0 0.0
    %88 = vmatpush.msra.mxu0 0.0
    %89 = vmatpush.msra.mxu0 0.0
    %90 = vmatpush.msra.mxu0 0.0
    %91 = vmatpush.msra.mxu0 0.0
    %92 = vmatpush.msra.mxu0 0.0
    %93 = vmatpush.msra.mxu0 0.0
    %94 = vmatpush.msra.mxu0 0.0
    %95 = vmatpush.msra.mxu0 0.0
    %96 = vmatpush.msra.mxu0 0.0
    %97 = vmatpush.msra.mxu0 0.0
    %98 = vmatpush.msra.mxu0 0.0
    %99 = vmatpush.msra.mxu0 0.0
    %100 = vmatpush.msra.mxu0 %v81
    %101 = vmatmul.f32.gmra.mxu0 %v78
    %v102 = vpop.f32.mrf.mxu0
    %v103 = vadd.f32 0.0, %v102
    %104 = vdwg.mxu0
    %105 = vmatpush.msra.mxu0 0.0
    %106 = vmatpush.msra.mxu0 0.0
    %107 = vmatpush.msra.mxu0 0.0
    %108 = vmatpush.msra.mxu0 0.0
    %109 = vmatpush.msra.mxu0 0.0
    %110 = vmatpush.msra.mxu0 0.0
    %111 = vmatpush.msra.mxu0 0.0
    %112 = vmatpush.msra.mxu0 0.0
    %113 = vmatpush.msra.mxu0 0.0
    %114 = vmatpush.msra.mxu0 0.0
    %115 = vmatpush.msra.mxu0 0.0
    %116 = vmatpush.msra.mxu0 0.0
    %117 = vmatpush.msra.mxu0 0.0
    %118 = vmatpush.msra.mxu0 0.0
    %119 = vmatpush.msra.mxu0 0.0
    %120 = vmatpush.msra.mxu0 %v83
    %121 = vmatmul.f32.gmra.mxu0 %v78
    %v122 = vpop.f32.mrf.mxu0
    %v123 = vadd.f32 0.0, %v122
    %124 = vdwg.mxu0
    %v126 = vsel %vm76, %v70, 0
    %v129 = vsel %vm80, %v68, 0
    %v132 = vsel %vm80, %v69, 0
    %134 = vmatpush.msra.mxu0 0.0
    %135 = vmatpush.msra.mxu0 0.0
    %136 = vmatpush.msra.mxu0 0.0
    %137 = vmatpush.msra.mxu0 0.0
    %138 = vmatpush.msra.mxu0 0.0
    %139 = vmatpush.msra.mxu0 0.0
    %140 = vmatpush.msra.mxu0 0.0
    %141 = vmatpush.msra.mxu0 0.0
    %142 = vmatpush.msra.mxu0 0.0
    %143 = vmatpush.msra.mxu0 0.0
    %144 = vmatpush.msra.mxu0 0.0
    %145 = vmatpush.msra.mxu0 0.0
    %146 = vmatpush.msra.mxu0 0.0
    %147 = vmatpush.msra.mxu0 0.0
    %148 = vmatpush.msra.mxu0 0.0
    %149 = vmatpush.msra.mxu0 %v129
    %150 = vmatmul.f32.gmra.mxu0 %v126
    %v151 = vpop.f32.mrf.mxu0
    %v152 = vadd.f32 %v103, %v151
    %153 = vdwg.mxu0
    %154 = vmatpush.msra.mxu0 0.0
    %155 = vmatpush.msra.mxu0 0.0
    %156 = vmatpush.msra.mxu0 0.0
    %157 = vmatpush.msra.mxu0 0.0
    %158 = vmatpush.msra.mxu0 0.0
    %159 = vmatpush.msra.mxu0 0.0
    %160 = vmatpush.msra.mxu0 0.0
    %161 = vmatpush.msra.mxu0 0.0
    %162 = vmatpush.msra.mxu0 0.0
    %163 = vmatpush.msra.mxu0 0.0
    %164 = vmatpush.msra.mxu0 0.0
    %165 = vmatpush.msra.mxu0 0.0
    %166 = vmatpush.msra.mxu0 0.0
    %167 = vmatpush.msra.mxu0 0.0
    %168 = vmatpush.msra.mxu0 0.0
    %169 = vmatpush.msra.mxu0 %v132
    %170 = vmatmul.f32.gmra.mxu0 %v126
    %v171 = vpop.f32.mrf.mxu0
    %v172 = vadd.f32 %v123, %v171
    %173 = vdwg.mxu0
    %174 = vst [vmem:[#allocation1] ss:$2 sm:$0xff] %v46
    %v175 = vld.sshfl [vmem:[#allocation1] sm:$0xff pattern:$0x75316420]
    %v176 = vld.sshfl [vmem:[#allocation1 + $0x8] sm:$0xff pattern:$0x75316420]
    %179 = vrot.lane.b32.xlu0 %v175, 127
    %v180 = vpop.permute.xlu0 %179
    %181 = vrot.lane.b32.xlu0 %v176, 127
    %v182 = vpop.permute.xlu0 %181
    %vm183 = vcmp.lt.s32.totalorder %v58, 127
    %v184 = vsel %vm183, %v180, %v182
    %v185 = vsel %vm183, %v182, %v180
    %s186 = scalar_lea.vmem %s4, 4
    %v187 = vld [vmem:[%s186] sm:$0x3]
    %v189 = vperm.slane %v187, 0
    %v190 = vperm.slane %v187, 1
    %v193 = vmul.f32 %v184, %v189
    %v194 = vmul.f32 %v185, %v190
    %s195 = scalar_lea.vmem %s1, 16
    %v196 = vld [vmem:[%s195] sm:$0x3f]
    %v198 = vsel %vm76, %v196, 0
    %v201 = vsel %vm80, %v193, 0
    %v204 = vsel %vm80, %v194, 0
    %206 = vmatpush.msra.mxu0 0.0
    %207 = vmatpush.msra.mxu0 0.0
    %208 = vmatpush.msra.mxu0 0.0
    %209 = vmatpush.msra.mxu0 0.0
    %210 = vmatpush.msra.mxu0 0.0
    %211 = vmatpush.msra.mxu0 0.0
    %212 = vmatpush.msra.mxu0 0.0
    %213 = vmatpush.msra.mxu0 0.0
    %214 = vmatpush.msra.mxu0 0.0
    %215 = vmatpush.msra.mxu0 0.0
    %216 = vmatpush.msra.mxu0 0.0
    %217 = vmatpush.msra.mxu0 0.0
    %218 = vmatpush.msra.mxu0 0.0
    %219 = vmatpush.msra.mxu0 0.0
    %220 = vmatpush.msra.mxu0 0.0
    %221 = vmatpush.msra.mxu0 %v201
    %222 = vmatmul.f32.gmra.mxu0 %v198
    %v223 = vpop.f32.mrf.mxu0
    %v224 = vadd.f32 0.0, %v223
    %225 = vdwg.mxu0
    %226 = vmatpush.msra.mxu0 0.0
    %227 = vmatpush.msra.mxu0 0.0
    %228 = vmatpush.msra.mxu0 0.0
    %229 = vmatpush.msra.mxu0 0.0
    %230 = vmatpush.msra.mxu0 0.0
    %231 = vmatpush.msra.mxu0 0.0
    %232 = vmatpush.msra.mxu0 0.0
    %233 = vmatpush.msra.mxu0 0.0
    %234 = vmatpush.msra.mxu0 0.0
    %235 = vmatpush.msra.mxu0 0.0
    %236 = vmatpush.msra.mxu0 0.0
    %237 = vmatpush.msra.mxu0 0.0
    %238 = vmatpush.msra.mxu0 0.0
    %239 = vmatpush.msra.mxu0 0.0
    %240 = vmatpush.msra.mxu0 0.0
    %241 = vmatpush.msra.mxu0 %v204
    %242 = vmatmul.f32.gmra.mxu0 %v198
    %v243 = vpop.f32.mrf.mxu0
    %v244 = vadd.f32 0.0, %v243
    %245 = vdwg.mxu0
    %v246 = vadd.f32 %v152, %v224
    %v247 = vadd.f32 %v172, %v244
    %v248 = vld [vmem:[%s2] sm:$0x3f]
    %250 = vset.pattern.permute.xlu0 0
    %251 = vperm.xlu0 %250, %v248
    %v252 = vpop.permute.xlu0 %251
    %v254 = vadd.f32 %v246, %v252
    %v255 = vadd.f32 %v247, %v252
    %256 = vrot.lane.b32.xlu0 %v254, 16
    %v257 = vpop.permute.xlu0 %256
    %258 = vrot.lane.b32.xlu0 %v255, 16
    %v259 = vpop.permute.xlu0 %258
    %vm260 = vcmp.lt.s32.totalorder %v58, 16
    %v261 = vsel %vm260, %v257, %v259
    %v262 = vsel %vm260, %v259, %v257
    %v263 = vld [vmem:[#allocation2] sm:$0x3]
    %v265 = vperm.slane %v263, 0
    %v266 = vperm.slane %v263, 1
    %v269 = vmul.f32 %v262, %v265
    %v270 = vmul.f32 %v261, %v266
    %v271 = vld [vmem:[%s3] sm:$0xff]
    %s272 = scalar_lea.vmem %s3, 8
    %v273 = vld [vmem:[%s272] sm:$0xff]
    %vm274 = vcmask 48128
    %v276 = vsel %vm274, %v273, 0
    %vm278 = vcmask 1045504
    %v280 = vsel %vm278, %v254, 0
    %v283 = vsel %vm278, %v255, 0
    %285 = vmatpush.msra.mxu0 0.0
    %286 = vmatpush.msra.mxu0 0.0
    %287 = vmatpush.msra.mxu0 0.0
    %288 = vmatpush.msra.mxu0 0.0
    %289 = vmatpush.msra.mxu0 0.0
    %290 = vmatpush.msra.mxu0 0.0
    %291 = vmatpush.msra.mxu0 0.0
    %292 = vmatpush.msra.mxu0 0.0
    %293 = vmatpush.msra.mxu0 0.0
    %294 = vmatpush.msra.mxu0 0.0
    %295 = vmatpush.msra.mxu0 0.0
    %296 = vmatpush.msra.mxu0 0.0
    %297 = vmatpush.msra.mxu0 0.0
    %298 = vmatpush.msra.mxu0 0.0
    %299 = vmatpush.msra.mxu0 0.0
    %300 = vmatpush.msra.mxu0 %v280
    %301 = vmatmul.f32.gmra.mxu0 %v276
    %v302 = vpop.f32.mrf.mxu0
    %v303 = vadd.f32 0.0, %v302
    %304 = vdwg.mxu0
    %305 = vmatpush.msra.mxu0 0.0
    %306 = vmatpush.msra.mxu0 0.0
    %307 = vmatpush.msra.mxu0 0.0
    %308 = vmatpush.msra.mxu0 0.0
    %309 = vmatpush.msra.mxu0 0.0
    %310 = vmatpush.msra.mxu0 0.0
    %311 = vmatpush.msra.mxu0 0.0
    %312 = vmatpush.msra.mxu0 0.0
    %313 = vmatpush.msra.mxu0 0.0
    %314 = vmatpush.msra.mxu0 0.0
    %315 = vmatpush.msra.mxu0 0.0
    %316 = vmatpush.msra.mxu0 0.0
    %317 = vmatpush.msra.mxu0 0.0
    %318 = vmatpush.msra.mxu0 0.0
    %319 = vmatpush.msra.mxu0 0.0
    %320 = vmatpush.msra.mxu0 %v283
    %321 = vmatmul.f32.gmra.mxu0 %v276
    %v322 = vpop.f32.mrf.mxu0
    %v323 = vadd.f32 0.0, %v322
    %324 = vdwg.mxu0
    %v326 = vsel %vm274, %v271, 0
    %v329 = vsel %vm278, %v269, 0
    %v332 = vsel %vm278, %v270, 0
    %334 = vmatpush.msra.mxu0 0.0
    %335 = vmatpush.msra.mxu0 0.0
    %336 = vmatpush.msra.mxu0 0.0
    %337 = vmatpush.msra.mxu0 0.0
    %338 = vmatpush.msra.mxu0 0.0
    %339 = vmatpush.msra.mxu0 0.0
    %340 = vmatpush.msra.mxu0 0.0
    %341 = vmatpush.msra.mxu0 0.0
    %342 = vmatpush.msra.mxu0 0.0
    %343 = vmatpush.msra.mxu0 0.0
    %344 = vmatpush.msra.mxu0 0.0
    %345 = vmatpush.msra.mxu0 0.0
    %346 = vmatpush.msra.mxu0 0.0
    %347 = vmatpush.msra.mxu0 0.0
    %348 = vmatpush.msra.mxu0 0.0
    %349 = vmatpush.msra.mxu0 %v329
    %350 = vmatmul.f32.gmra.mxu0 %v326
    %v351 = vpop.f32.mrf.mxu0
    %v352 = vadd.f32 %v303, %v351
    %353 = vdwg.mxu0
    %354 = vmatpush.msra.mxu0 0.0
    %355 = vmatpush.msra.mxu0 0.0
    %356 = vmatpush.msra.mxu0 0.0
    %357 = vmatpush.msra.mxu0 0.0
    %358 = vmatpush.msra.mxu0 0.0
    %359 = vmatpush.msra.mxu0 0.0
    %360 = vmatpush.msra.mxu0 0.0
    %361 = vmatpush.msra.mxu0 0.0
    %362 = vmatpush.msra.mxu0 0.0
    %363 = vmatpush.msra.mxu0 0.0
    %364 = vmatpush.msra.mxu0 0.0
    %365 = vmatpush.msra.mxu0 0.0
    %366 = vmatpush.msra.mxu0 0.0
    %367 = vmatpush.msra.mxu0 0.0
    %368 = vmatpush.msra.mxu0 0.0
    %369 = vmatpush.msra.mxu0 %v332
    %370 = vmatmul.f32.gmra.mxu0 %v326
    %v371 = vpop.f32.mrf.mxu0
    %v372 = vadd.f32 %v323, %v371
    %373 = vdwg.mxu0
    %374 = vrot.lane.b32.xlu0 %v254, 112
    %v375 = vpop.permute.xlu0 %374
    %376 = vrot.lane.b32.xlu0 %v255, 112
    %v377 = vpop.permute.xlu0 %376
    %vm378 = vcmp.lt.s32.totalorder %v58, 112
    %v379 = vsel %vm378, %v375, %v377
    %v380 = vsel %vm378, %v377, %v375
    %s381 = scalar_lea.vmem [#allocation2], 4
    %v382 = vld [vmem:[%s381] sm:$0x3]
    %v384 = vperm.slane %v382, 0
    %v385 = vperm.slane %v382, 1
    %v388 = vmul.f32 %v379, %v384
    %v389 = vmul.f32 %v380, %v385
    %s390 = scalar_lea.vmem %s3, 16
    %v391 = vld [vmem:[%s390] sm:$0xff]
    %v393 = vsel %vm274, %v391, 0
    %v396 = vsel %vm278, %v388, 0
    %v399 = vsel %vm278, %v389, 0
    %401 = vmatpush.msra.mxu0 0.0
    %402 = vmatpush.msra.mxu0 0.0
    %403 = vmatpush.msra.mxu0 0.0
    %404 = vmatpush.msra.mxu0 0.0
    %405 = vmatpush.msra.mxu0 0.0
    %406 = vmatpush.msra.mxu0 0.0
    %407 = vmatpush.msra.mxu0 0.0
    %408 = vmatpush.msra.mxu0 0.0
    %409 = vmatpush.msra.mxu0 0.0
    %410 = vmatpush.msra.mxu0 0.0
    %411 = vmatpush.msra.mxu0 0.0
    %412 = vmatpush.msra.mxu0 0.0
    %413 = vmatpush.msra.mxu0 0.0
    %414 = vmatpush.msra.mxu0 0.0
    %415 = vmatpush.msra.mxu0 0.0
    %416 = vmatpush.msra.mxu0 %v396
    %417 = vmatmul.f32.gmra.mxu0 %v393
    %v418 = vpop.f32.mrf.mxu0
    %v419 = vadd.f32 0.0, %v418
    %420 = vdwg.mxu0
    %421 = vmatpush.msra.mxu0 0.0
    %422 = vmatpush.msra.mxu0 0.0
    %423 = vmatpush.msra.mxu0 0.0
    %424 = vmatpush.msra.mxu0 0.0
    %425 = vmatpush.msra.mxu0 0.0
    %426 = vmatpush.msra.mxu0 0.0
    %427 = vmatpush.msra.mxu0 0.0
    %428 = vmatpush.msra.mxu0 0.0
    %429 = vmatpush.msra.mxu0 0.0
    %430 = vmatpush.msra.mxu0 0.0
    %431 = vmatpush.msra.mxu0 0.0
    %432 = vmatpush.msra.mxu0 0.0
    %433 = vmatpush.msra.mxu0 0.0
    %434 = vmatpush.msra.mxu0 0.0
    %435 = vmatpush.msra.mxu0 0.0
    %436 = vmatpush.msra.mxu0 %v399
    %437 = vmatmul.f32.gmra.mxu0 %v393
    %v438 = vpop.f32.mrf.mxu0
    %v439 = vadd.f32 0.0, %v438
    %440 = vdwg.mxu0
    %v441 = vadd.f32 %v352, %v419
    %v442 = vadd.f32 %v372, %v439
    %s443 = scalar_lea.vmem %s0, 8
    %v444 = vld [vmem:[%s443] sm:$0xff]
    %446 = vst [vmem:[#allocation1] ss:$2 sm:$0xff] %v444
    %v447 = vld.sshfl [vmem:[#allocation1] sm:$0xff pattern:$0x75316420]
    %v448 = vld.sshfl [vmem:[#allocation1 + $0x8] sm:$0xff pattern:$0x75316420]
    %451 = vrot.lane.b32.xlu0 %v447, 1
    %v452 = vpop.permute.xlu0 %451
    %453 = vrot.lane.b32.xlu0 %v448, 1
    %v454 = vpop.permute.xlu0 %453
    %v455 = vsel %vm59, %v452, %v454
    %v456 = vsel %vm59, %v454, %v452
    %v457 = vmul.f32 %v456, %v64
    %v458 = vmul.f32 %v455, %v65
    %459 = vst [vmem:[#allocation1] ss:$2 sm:$0xff] %v444
    %v460 = vld.sshfl [vmem:[#allocation1] sm:$0xff pattern:$0x75316420]
    %v461 = vld.sshfl [vmem:[#allocation1 + $0x8] sm:$0xff pattern:$0x75316420]
    %v462 = vsel %vm80, %v460, 0
    %v464 = vsel %vm80, %v461, 0
    %466 = vmatpush.msra.mxu0 0.0
    %467 = vmatpush.msra.mxu0 0.0
    %468 = vmatpush.msra.mxu0 0.0
    %469 = vmatpush.msra.mxu0 0.0
    %470 = vmatpush.msra.mxu0 0.0
    %471 = vmatpush.msra.mxu0 0.0
    %472 = vmatpush.msra.mxu0 0.0
    %473 = vmatpush.msra.mxu0 0.0
    %474 = vmatpush.msra.mxu0 0.0
    %475 = vmatpush.msra.mxu0 0.0
    %476 = vmatpush.msra.mxu0 0.0
    %477 = vmatpush.msra.mxu0 0.0
    %478 = vmatpush.msra.mxu0 0.0
    %479 = vmatpush.msra.mxu0 0.0
    %480 = vmatpush.msra.mxu0 0.0
    %481 = vmatpush.msra.mxu0 %v462
    %482 = vmatmul.f32.gmra.mxu0 %v78
    %v483 = vpop.f32.mrf.mxu0
    %v484 = vadd.f32 0.0, %v483
    %485 = vdwg.mxu0
    %486 = vmatpush.msra.mxu0 0.0
    %487 = vmatpush.msra.mxu0 0.0
    %488 = vmatpush.msra.mxu0 0.0
    %489 = vmatpush.msra.mxu0 0.0
    %490 = vmatpush.msra.mxu0 0.0
    %491 = vmatpush.msra.mxu0 0.0
    %492 = vmatpush.msra.mxu0 0.0
    %493 = vmatpush.msra.mxu0 0.0
    %494 = vmatpush.msra.mxu0 0.0
    %495 = vmatpush.msra.mxu0 0.0
    %496 = vmatpush.msra.mxu0 0.0
    %497 = vmatpush.msra.mxu0 0.0
    %498 = vmatpush.msra.mxu0 0.0
    %499 = vmatpush.msra.mxu0 0.0
    %500 = vmatpush.msra.mxu0 0.0
    %501 = vmatpush.msra.mxu0 %v464
    %502 = vmatmul.f32.gmra.mxu0 %v78
    %v503 = vpop.f32.mrf.mxu0
    %v504 = vadd.f32 0.0, %v503
    %505 = vdwg.mxu0
    %v507 = vsel %vm80, %v457, 0
    %v510 = vsel %vm80, %v458, 0
    %512 = vmatpush.msra.mxu0 0.0
    %513 = vmatpush.msra.mxu0 0.0
    %514 = vmatpush.msra.mxu0 0.0
    %515 = vmatpush.msra.mxu0 0.0
    %516 = vmatpush.msra.mxu0 0.0
    %517 = vmatpush.msra.mxu0 0.0
    %518 = vmatpush.msra.mxu0 0.0
    %519 = vmatpush.msra.mxu0 0.0
    %520 = vmatpush.msra.mxu0 0.0
    %521 = vmatpush.msra.mxu0 0.0
    %522 = vmatpush.msra.mxu0 0.0
    %523 = vmatpush.msra.mxu0 0.0
    %524 = vmatpush.msra.mxu0 0.0
    %525 = vmatpush.msra.mxu0 0.0
    %526 = vmatpush.msra.mxu0 0.0
    %527 = vmatpush.msra.mxu0 %v507
    %528 = vmatmul.f32.gmra.mxu0 %v126
    %v529 = vpop.f32.mrf.mxu0
    %v530 = vadd.f32 %v484, %v529
    %531 = vdwg.mxu0
    %532 = vmatpush.msra.mxu0 0.0
    %533 = vmatpush.msra.mxu0 0.0
    %534 = vmatpush.msra.mxu0 0.0
    %535 = vmatpush.msra.mxu0 0.0
    %536 = vmatpush.msra.mxu0 0.0
    %537 = vmatpush.msra.mxu0 0.0
    %538 = vmatpush.msra.mxu0 0.0
    %539 = vmatpush.msra.mxu0 0.0
    %540 = vmatpush.msra.mxu0 0.0
    %541 = vmatpush.msra.mxu0 0.0
    %542 = vmatpush.msra.mxu0 0.0
    %543 = vmatpush.msra.mxu0 0.0
    %544 = vmatpush.msra.mxu0 0.0
    %545 = vmatpush.msra.mxu0 0.0
    %546 = vmatpush.msra.mxu0 0.0
    %547 = vmatpush.msra.mxu0 %v510
    %548 = vmatmul.f32.gmra.mxu0 %v126
    %v549 = vpop.f32.mrf.mxu0
    %v550 = vadd.f32 %v504, %v549
    %551 = vdwg.mxu0
    %552 = vst [vmem:[#allocation1] ss:$2 sm:$0xff] %v444
    %v553 = vld.sshfl [vmem:[#allocation1] sm:$0xff pattern:$0x75316420]
    %v554 = vld.sshfl [vmem:[#allocation1 + $0x8] sm:$0xff pattern:$0x75316420]
    %557 = vrot.lane.b32.xlu0 %v553, 127
    %v558 = vpop.permute.xlu0 %557
    %559 = vrot.lane.b32.xlu0 %v554, 127
    %v560 = vpop.permute.xlu0 %559
    %v561 = vsel %vm183, %v558, %v560
    %v562 = vsel %vm183, %v560, %v558
    %v563 = vmul.f32 %v561, %v189
    %v564 = vmul.f32 %v562, %v190
    %v566 = vsel %vm80, %v563, 0
    %v569 = vsel %vm80, %v564, 0
    %571 = vmatpush.msra.mxu0 0.0
    %572 = vmatpush.msra.mxu0 0.0
    %573 = vmatpush.msra.mxu0 0.0
    %574 = vmatpush.msra.mxu0 0.0
    %575 = vmatpush.msra.mxu0 0.0
    %576 = vmatpush.msra.mxu0 0.0
    %577 = vmatpush.msra.mxu0 0.0
    %578 = vmatpush.msra.mxu0 0.0
    %579 = vmatpush.msra.mxu0 0.0
    %580 = vmatpush.msra.mxu0 0.0
    %581 = vmatpush.msra.mxu0 0.0
    %582 = vmatpush.msra.mxu0 0.0
    %583 = vmatpush.msra.mxu0 0.0
    %584 = vmatpush.msra.mxu0 0.0
    %585 = vmatpush.msra.mxu0 0.0
    %586 = vmatpush.msra.mxu0 %v566
    %587 = vmatmul.f32.gmra.mxu0 %v198
    %v588 = vpop.f32.mrf.mxu0
    %v589 = vadd.f32 0.0, %v588
    %590 = vdwg.mxu0
    %591 = vmatpush.msra.mxu0 0.0
    %592 = vmatpush.msra.mxu0 0.0
    %593 = vmatpush.msra.mxu0 0.0
    %594 = vmatpush.msra.mxu0 0.0
    %595 = vmatpush.msra.mxu0 0.0
    %596 = vmatpush.msra.mxu0 0.0
    %597 = vmatpush.msra.mxu0 0.0
    %598 = vmatpush.msra.mxu0 0.0
    %599 = vmatpush.msra.mxu0 0.0
    %600 = vmatpush.msra.mxu0 0.0
    %601 = vmatpush.msra.mxu0 0.0
    %602 = vmatpush.msra.mxu0 0.0
    %603 = vmatpush.msra.mxu0 0.0
    %604 = vmatpush.msra.mxu0 0.0
    %605 = vmatpush.msra.mxu0 0.0
    %606 = vmatpush.msra.mxu0 %v569
    %607 = vmatmul.f32.gmra.mxu0 %v198
    %v608 = vpop.f32.mrf.mxu0
    %v609 = vadd.f32 0.0, %v608
    %610 = vdwg.mxu0
    %v611 = vadd.f32 %v530, %v589
    %v612 = vadd.f32 %v550, %v609
    %v613 = vadd.f32 %v611, %v252
    %v614 = vadd.f32 %v612, %v252
    %615 = vrot.lane.b32.xlu0 %v613, 16
    %v616 = vpop.permute.xlu0 %615
    %617 = vrot.lane.b32.xlu0 %v614, 16
    %v618 = vpop.permute.xlu0 %617
    %v619 = vsel %vm260, %v616, %v618
    %v620 = vsel %vm260, %v618, %v616
    %v621 = vmul.f32 %v620, %v265
    %v622 = vmul.f32 %v619, %v266
    %v624 = vsel %vm278, %v613, 0
    %v627 = vsel %vm278, %v614, 0
    %629 = vmatpush.msra.mxu0 0.0
    %630 = vmatpush.msra.mxu0 0.0
    %631 = vmatpush.msra.mxu0 0.0
    %632 = vmatpush.msra.mxu0 0.0
    %633 = vmatpush.msra.mxu0 0.0
    %634 = vmatpush.msra.mxu0 0.0
    %635 = vmatpush.msra.mxu0 0.0
    %636 = vmatpush.msra.mxu0 0.0
    %637 = vmatpush.msra.mxu0 0.0
    %638 = vmatpush.msra.mxu0 0.0
    %639 = vmatpush.msra.mxu0 0.0
    %640 = vmatpush.msra.mxu0 0.0
    %641 = vmatpush.msra.mxu0 0.0
    %642 = vmatpush.msra.mxu0 0.0
    %643 = vmatpush.msra.mxu0 0.0
    %644 = vmatpush.msra.mxu0 %v624
    %645 = vmatmul.f32.gmra.mxu0 %v276
    %v646 = vpop.f32.mrf.mxu0
    %v647 = vadd.f32 0.0, %v646
    %648 = vdwg.mxu0
    %649 = vmatpush.msra.mxu0 0.0
    %650 = vmatpush.msra.mxu0 0.0
    %651 = vmatpush.msra.mxu0 0.0
    %652 = vmatpush.msra.mxu0 0.0
    %653 = vmatpush.msra.mxu0 0.0
    %654 = vmatpush.msra.mxu0 0.0
    %655 = vmatpush.msra.mxu0 0.0
    %656 = vmatpush.msra.mxu0 0.0
    %657 = vmatpush.msra.mxu0 0.0
    %658 = vmatpush.msra.mxu0 0.0
    %659 = vmatpush.msra.mxu0 0.0
    %660 = vmatpush.msra.mxu0 0.0
    %661 = vmatpush.msra.mxu0 0.0
    %662 = vmatpush.msra.mxu0 0.0
    %663 = vmatpush.msra.mxu0 0.0
    %664 = vmatpush.msra.mxu0 %v627
    %665 = vmatmul.f32.gmra.mxu0 %v276
    %v666 = vpop.f32.mrf.mxu0
    %v667 = vadd.f32 0.0, %v666
    %668 = vdwg.mxu0
    %v670 = vsel %vm278, %v621, 0
    %v673 = vsel %vm278, %v622, 0
    %675 = vmatpush.msra.mxu0 0.0
    %676 = vmatpush.msra.mxu0 0.0
    %677 = vmatpush.msra.mxu0 0.0
    %678 = vmatpush.msra.mxu0 0.0
    %679 = vmatpush.msra.mxu0 0.0
    %680 = vmatpush.msra.mxu0 0.0
    %681 = vmatpush.msra.mxu0 0.0
    %682 = vmatpush.msra.mxu0 0.0
    %683 = vmatpush.msra.mxu0 0.0
    %684 = vmatpush.msra.mxu0 0.0
    %685 = vmatpush.msra.mxu0 0.0
    %686 = vmatpush.msra.mxu0 0.0
    %687 = vmatpush.msra.mxu0 0.0
    %688 = vmatpush.msra.mxu0 0.0
    %689 = vmatpush.msra.mxu0 0.0
    %690 = vmatpush.msra.mxu0 %v670
    %691 = vmatmul.f32.gmra.mxu0 %v326
    %v692 = vpop.f32.mrf.mxu0
    %v693 = vadd.f32 %v647, %v692
    %694 = vdwg.mxu0
    %695 = vmatpush.msra.mxu0 0.0
    %696 = vmatpush.msra.mxu0 0.0
    %697 = vmatpush.msra.mxu0 0.0
    %698 = vmatpush.msra.mxu0 0.0
    %699 = vmatpush.msra.mxu0 0.0
    %700 = vmatpush.msra.mxu0 0.0
    %701 = vmatpush.msra.mxu0 0.0
    %702 = vmatpush.msra.mxu0 0.0
    %703 = vmatpush.msra.mxu0 0.0
    %704 = vmatpush.msra.mxu0 0.0
    %705 = vmatpush.msra.mxu0 0.0
    %706 = vmatpush.msra.mxu0 0.0
    %707 = vmatpush.msra.mxu0 0.0
    %708 = vmatpush.msra.mxu0 0.0
    %709 = vmatpush.msra.mxu0 0.0
    %710 = vmatpush.msra.mxu0 %v673
    %711 = vmatmul.f32.gmra.mxu0 %v326
    %v712 = vpop.f32.mrf.mxu0
    %v713 = vadd.f32 %v667, %v712
    %714 = vdwg.mxu0
    %715 = vrot.lane.b32.xlu0 %v613, 112
    %v716 = vpop.permute.xlu0 %715
    %717 = vrot.lane.b32.xlu0 %v614, 112
    %v718 = vpop.permute.xlu0 %717
    %v719 = vsel %vm378, %v716, %v718
    %v720 = vsel %vm378, %v718, %v716
    %v721 = vmul.f32 %v719, %v384
    %v722 = vmul.f32 %v720, %v385
    %v724 = vsel %vm278, %v721, 0
    %v727 = vsel %vm278, %v722, 0
    %729 = vmatpush.msra.mxu0 0.0
    %730 = vmatpush.msra.mxu0 0.0
    %731 = vmatpush.msra.mxu0 0.0
    %732 = vmatpush.msra.mxu0 0.0
    %733 = vmatpush.msra.mxu0 0.0
    %734 = vmatpush.msra.mxu0 0.0
    %735 = vmatpush.msra.mxu0 0.0
    %736 = vmatpush.msra.mxu0 0.0
    %737 = vmatpush.msra.mxu0 0.0
    %738 = vmatpush.msra.mxu0 0.0
    %739 = vmatpush.msra.mxu0 0.0
    %740 = vmatpush.msra.mxu0 0.0
    %741 = vmatpush.msra.mxu0 0.0
    %742 = vmatpush.msra.mxu0 0.0
    %743 = vmatpush.msra.mxu0 0.0
    %744 = vmatpush.msra.mxu0 %v724
    %745 = vmatmul.f32.gmra.mxu0 %v393
    %v746 = vpop.f32.mrf.mxu0
    %v747 = vadd.f32 0.0, %v746
    %748 = vdwg.mxu0
    %749 = vmatpush.msra.mxu0 0.0
    %750 = vmatpush.msra.mxu0 0.0
    %751 = vmatpush.msra.mxu0 0.0
    %752 = vmatpush.msra.mxu0 0.0
    %753 = vmatpush.msra.mxu0 0.0
    %754 = vmatpush.msra.mxu0 0.0
    %755 = vmatpush.msra.mxu0 0.0
    %756 = vmatpush.msra.mxu0 0.0
    %757 = vmatpush.msra.mxu0 0.0
    %758 = vmatpush.msra.mxu0 0.0
    %759 = vmatpush.msra.mxu0 0.0
    %760 = vmatpush.msra.mxu0 0.0
    %761 = vmatpush.msra.mxu0 0.0
    %762 = vmatpush.msra.mxu0 0.0
    %763 = vmatpush.msra.mxu0 0.0
    %764 = vmatpush.msra.mxu0 %v727
    %765 = vmatmul.f32.gmra.mxu0 %v393
    %v766 = vpop.f32.mrf.mxu0
    %v767 = vadd.f32 0.0, %v766
    %768 = vdwg.mxu0
    %v769 = vadd.f32 %v693, %v747
    %v770 = vadd.f32 %v713, %v767
    %v771 = vadd.f32 %v441, %v442
    %772 = vadd.xlane.f32.xlu0 %v771
    %v773 = vpop.xlane.xlu0 %772
    %v774 = vadd.f32 %v769, %v770
    %775 = vadd.xlane.f32.xlu0 %v774
    %v776 = vpop.xlane.xlu0 %775
    %v777 = vadd.f32 %v773, %v776
    %v778 = vmul.f32 %v777, 0.001953125
    %v779 = vsub.f32 %v441, %v778
    %v780 = vsub.f32 %v442, %v778
    %v781 = vmul.f32 %v779, %v779
    %v782 = vmul.f32 %v780, %v780
    %v783 = vadd.f32 %v781, %v782
    %784 = vadd.xlane.f32.xlu0 %v783
    %v785 = vpop.xlane.xlu0 %784
    %v786 = vadd.f32 %v785, 0.0
    %v787 = vsub.f32 %v769, %v778
    %v788 = vsub.f32 %v770, %v778
    %v789 = vmul.f32 %v787, %v787
    %v790 = vmul.f32 %v788, %v788
    %v791 = vadd.f32 %v789, %v790
    %792 = vadd.xlane.f32.xlu0 %v791
    %v793 = vpop.xlane.xlu0 %792
    %v794 = vadd.f32 %v786, %v793
    %v795 = vmul.f32 %v794, 0.001953125
    %v796 = vld [vmem:[%s6] sm:$0xff]
    %v797 = vadd.f32 %v795, 1e-05
    %v798 = vrsqrt.pop %v797
    %v799 = vmul.f32 %v798, %v797
    %v800 = vmul.f32 %v799, %v798
    %v801 = vmul.f32 0.5, %v800
    %v802 = vsub.f32 1.5, %v801
    %v803 = vmul.f32 %v798, %v802
    %vm804 = vweird.f32 %v797
    %vm805 = vweird.f32 %v798
    %vm806 = vmor %vm804, %vm805
    %v807 = vsel %vm806, %v798, %v803
    %v808 = vmul.f32 %v796, %v807
    %v809 = vld [vmem:[%s7] sm:$0xff]
    %v810 = vmul.f32 %v778, %v808
    %v811 = vsub.f32 %v809, %v810
    %813 = vset.pattern.permute.xlu0 0
    %814 = vperm.xlu0 %813, %v808
    %v815 = vpop.permute.xlu0 %814
    %v817 = vmul.f32 %v441, %v815
    %v818 = vmul.f32 %v442, %v815
    %820 = vset.pattern.permute.xlu0 0
    %821 = vperm.xlu0 %820, %v811
    %v822 = vpop.permute.xlu0 %821
    %v824 = vadd.f32 %v817, %v822
    %v825 = vadd.f32 %v818, %v822
    %v826 = vmax.f32 %v824, 0.0
    %v827 = vmax.f32 %v825, 0.0
    %828 = vst [vmem:[#allocation5] sm:$0xff] %v826
    %829 = vst [vmem:[#allocation5 + $0x8] sm:$0xff] %v827
    %v830 = vmul.f32 %v769, %v815
    %v831 = vmul.f32 %v770, %v815
    %v832 = vadd.f32 %v830, %v822
    %v833 = vadd.f32 %v831, %v822
    %v834 = vmax.f32 %v832, 0.0
    %v835 = vmax.f32 %v833, 0.0
    %s836 = scalar_lea.vmem [#allocation5], 16
    %837 = vst [vmem:[%s836] sm:$0xff] %v834
    %838 = vst [vmem:[%s836 + $0x8] sm:$0xff] %v835
    // Predicated region
    $region38: #{tpu_custom_call.1} parent=1 // pred_check
      _
    $region39: #{tpu_custom_call.1} parent=1 // pred_check_branch
      %840 = sbr.rel (0) target = $region41
    $region40: #{tpu_custom_call.1} parent=1 // pred_region
      %842 = vsyncadd [#allocation4], 0
      %s843 = sshll.u32 [#allocation5], 4
      %s844 = int_to_ptr.vmem [resolvable:$true] %s843
      %s845 = sshll.u32 %s8, 4
      %s846 = int_to_ptr.hbm [resolvable:$true] %s845
      %851 = dma.vmem_to_hbm [thread:$0]  %s844, 512, %s846, [#allocation4], 256, 256, 16
    $region41: #{tpu_custom_call.1} parent=1 // pred_fallthru
      _
    // Predicated region
    $region42: #{tpu_custom_call.1} parent=1 // pred_check
      _
    $region43: #{tpu_custom_call.1} parent=1 // pred_check_branch
      %853 = sbr.rel (0) target = $region45
    $region44: #{tpu_custom_call.1} parent=1 // pred_region
      %855 = dma.done [#allocation4], 512
    $region45: #{tpu_custom_call.1} parent=1 // pred_fallthru
      _
    %856 = vsyncpa [#allocation3], 1
    %857 = vsyncpa [#allocation4], 1

</llo_original>
